<compile_context>
chip_gen: v5e
topology: v5e:2x2
jax: 0.10.0
libtpu: 0.0.40
codegen_flags: <defaults>
</compile_context>

<pallas_src>
import functools

import jax
import jax.numpy as jnp
from jax.experimental import pallas as pl
from jax.experimental.pallas import tpu as pltpu

_LANE = 128
_SUBLANE = 8
_NEG = -1e30          # masks padded softmax columns via the output bias
_BN_EPS = 1e-5


def _round_up(n, m):
    return ((n + m - 1) // m) * m


def _cdiv(a, b):
    return -(-a // b)


# --------------------------------------------------------------------------- kernel


def _make_kernel(num_hidden_layers, batch_norm, b_real, compute_dtype):
    """Builds the kernel body; the layer loop is unrolled at trace time.

    Ref order: x, W_in, W_h x L, W_out, vec_stack, out.
    vec_stack rows: b_in, then per hidden layer [b_h, (gamma, beta)], then b_out.
    """
    nw = num_hidden_layers + 2

    def kernel(*refs):
        x_ref = refs[0]
        w_refs = refs[1:1 + nw]
        vec_ref = refs[1 + nw]
        out_ref = refs[2 + nw]

        hid_p = w_refs[0].shape[1]
        out_p = w_refs[-1].shape[1]

        def linear(h, w_ref, bias_row, width):
            # bf16 MXU inputs, f32 accumulate, f32 bias add.
            y = jnp.dot(
                h.astype(compute_dtype),
                w_ref[...],
                preferred_element_type=jnp.float32,
            )
            return y + vec_ref[bias_row:bias_row + 1, :width]

        if batch_norm:
            # Static row-validity mask: BN statistics only over real batch rows
            # (the batch tile equals the full padded batch when batch_norm=True).
            tb = x_ref.shape[0]
            row_ids = jax.lax.broadcasted_iota(jnp.int32, (tb, 1), 0)
            valid = (row_ids < b_real).astype(jnp.float32)
            inv_n = 1.0 / float(b_real)

        vrow = 0

        # --- input linear + ReLU ---
        h = linear(x_ref[...], w_refs[0], vrow, hid_p)
        vrow += 1
        h = jnp.maximum(h, 0.0)

        # --- hidden layers: Linear (+ BatchNorm1d training-mode stats) + ReLU ---
        for l in range(num_hidden_layers):
            h = linear(h, w_refs[1 + l], vrow, hid_p)
            vrow += 1
            if batch_norm:
                gamma = vec_ref[vrow:vrow + 1, :hid_p]
                beta = vec_ref[vrow + 1:vrow + 2, :hid_p]
                vrow += 2
                # Single-pass statistics: var = E[x^2] - mean^2 (padded rows excluded).
                hv = h * valid
                s1 = jnp.sum(hv, axis=0, keepdims=True)
                s2 = jnp.sum(hv * h, axis=0, keepdims=True)
                mean = s1 * inv_n
                var = jnp.maximum(s2 * inv_n - mean * mean, 0.0)
                h = (h - mean) * jax.lax.rsqrt(var + _BN_EPS) * gamma + beta
            h = jnp.maximum(h, 0.0)

        # --- output linear (padded columns carry a -1e30 bias -> exp == 0) ---
        logits = linear(h, w_refs[-1], vrow, out_p)

        # --- softmax over dim=1: EUP approx reciprocal + one Newton step ---
        m = jnp.max(logits, axis=1, keepdims=True)
        e = jnp.exp(logits - m)
        s = jnp.sum(e, axis=1, keepdims=True)
        inv = pl.reciprocal(s, approx=True)
        inv = inv * (2.0 - s * inv)        # NR refinement -> f32-accurate row sums
        out_ref[...] = e * inv

    return kernel


# ------------------------------------------------------------------------- wrapper


def _prepare_params(params, input_dim, output_dim, hidden_dim,
                    num_hidden_layers, batch_norm, weight_dtype):
    """Lane-pad weights (bf16) and pack all 1-D vectors into one stacked f32 operand."""
    in_p = _round_up(input_dim, _LANE)
    hid_p = _round_up(hidden_dim, _LANE)
    out_p = _round_up(output_dim, _LANE)
    vec_w = max(hid_p, out_p)

    def pad_w(a, rows, cols):
        a = jnp.asarray(a, jnp.float32)
        a = jnp.pad(a, ((0, rows - a.shape[0]), (0, cols - a.shape[1])))
        return a.astype(weight_dtype)

    def pad_vec(a, width, fill=0.0):
        a = jnp.asarray(a, jnp.float32).reshape(1, -1)
        a = jnp.pad(a, ((0, 0), (0, vec_w - a.shape[1])), constant_values=fill)
        return a

    weights, vecs = [], []
    idx = 0
    weights.append(pad_w(params[idx], in_p, hid_p))            # W_in
    vecs.append(pad_vec(params[idx + 1], hid_p))                # b_in
    idx += 2
    for _ in range(num_hidden_layers):
        weights.append(pad_w(params[idx], hid_p, hid_p))        # W_h
        vecs.append(pad_vec(params[idx + 1], hid_p))            # b_h
        idx += 2
        if batch_norm:
            vecs.append(pad_vec(params[idx], hid_p, fill=1.0))      # gamma
            vecs.append(pad_vec(params[idx + 1], hid_p, fill=0.0))  # beta
            idx += 2
    weights.append(pad_w(params[idx], hid_p, out_p))            # W_out
    vecs.append(pad_vec(params[idx + 1], out_p, fill=_NEG))     # b_out (masks pads)

    vec_stack = jnp.concatenate(vecs, axis=0)                   # (n_vec, vec_w) f32
    return weights, vec_stack, (in_p, hid_p, out_p)


def _vmem_capacity_bytes():
    """Physical VMEM of the current generation (fallback: assume v7x 64 MiB)."""
    try:
        info = pltpu.get_tpu_info()
        for name in ("vmem_capacity_bytes", "vmem_size_bytes", "vmem_bytes"):
            v = getattr(info, name, None)
            if v:
                return int(v)
    except Exception:
        pass
    return 64 * 2**20


def _pick_batch_tile(b8, max_batch_tile):
    """Balanced batch tile, bumped to MXU-friendly sizes when padding stays small."""
    max_tb = _round_up(max_batch_tile, _SUBLANE)
    n_tiles = _cdiv(b8, max_tb)
    tb = _round_up(_cdiv(b8, n_tiles), _SUBLANE)
    # Prefer multiples of 256 (v6e/v7x MXU) or 128 if it inflates padding by <= ~12.5%.
    for align in (256, 128):
        cand = _round_up(tb, align)
        if _round_up(b8, cand) * 8 <= _round_up(b8, tb) * 9:
            return cand
    return tb


def dnn_forward(x, params, *, input_dim, output_dim, hidden_dim,
                num_hidden_layers, batch_norm,
                weight_dtype=jnp.bfloat16, max_batch_tile=512,
                single_buffer_params=True):
    """Pallas-backed forward pass mirroring DNN.forward (training-mode BN)."""
    x2d = jnp.asarray(x, jnp.float32).reshape(-1, input_dim)
    b_real = x2d.shape[0]

    weights, vec_stack, (in_p, hid_p, out_p) = _prepare_params(
        params, input_dim, output_dim, hidden_dim,
        num_hidden_layers, batch_norm, weight_dtype)

    # --- batch tiling -------------------------------------------------------
    b8 = _round_up(b_real, _SUBLANE)
    if batch_norm:
        # Full-batch statistics => one batch tile preserves exact BN semantics.
        # TODO(synk): two-pass cross-tile BN so large batches tile (and shard on v7x).
        tb = b8
    else:
        tb = _pick_batch_tile(b8, max_batch_tile)
    b_pad = _round_up(b8, tb)
    grid = (b_pad // tb,)

    # bf16 input DMA (kernel casts to bf16 before the first matmul anyway).
    x_padded = jnp.pad(x2d.astype(jnp.bfloat16),
                       ((0, b_pad - b_real), (0, in_p - input_dim)))

    # Note: b_real is a Python constant, but distinct batch sizes already retrace
    # (static shapes), so this causes no extra recompiles.
    kernel = _make_kernel(num_hidden_layers, batch_norm, b_real, weight_dtype)

    # --- BlockSpecs ----------------------------------------------------------
    resident_kw = dict(pipeline_mode=pl.Buffered(1)) if single_buffer_params else {}
    const_map = lambda i: (0, 0)
    in_specs = [pl.BlockSpec((tb, in_p), lambda i: (i, 0))]
    in_specs += [pl.BlockSpec(w.shape, const_map, **resident_kw) for w in weights]
    in_specs += [pl.BlockSpec(vec_stack.shape, const_map, **resident_kw)]
    out_spec = pl.BlockSpec((tb, out_p), lambda i: (i, 0))

    # --- VMEM budget (generation-aware) --------------------------------------
    param_bufs = 1 if single_buffer_params else 2
    param_bytes = (sum(w.size * w.dtype.itemsize for w in weights)
                   + vec_stack.size * 4)
    est_vmem = (param_bufs * param_bytes
                + 2 * tb * in_p * 2           # double-buffered bf16 x tile
                + 2 * tb * out_p * 4          # double-buffered f32 out tile
                + 6 * tb * hid_p * 4          # live f32 activations + BN temps
                + 2 * tb * hid_p * 2)         # bf16 matmul-input copies
    vmem_cap = int(_vmem_capacity_bytes() * 0.82)   # ~105 MiB v5e/v6e, ~52 MiB v7x
    vmem_limit = int(min(vmem_cap, max(32 * 2**20, 2 * est_vmem)))

    # --- cost estimate for XLA scheduling around the custom call -------------
    flops = 2 * b_pad * (in_p * hid_p
                         + num_hidden_layers * hid_p * hid_p
                         + hid_p * out_p)
    transcendentals = (b_pad * out_p + b_pad
                       + (num_hidden_layers * hid_p if batch_norm else 0))
    bytes_accessed = param_bytes + b_pad * in_p * 2 + b_pad * out_p * 4

    out_padded = pl.pallas_call(
        kernel,
        out_shape=jax.ShapeDtypeStruct((b_pad, out_p), jnp.float32),
        grid=grid,
        in_specs=in_specs,
        out_specs=out_spec,
        compiler_params=pltpu.CompilerParams(
            dimension_semantics=("parallel",),
            vmem_limit_bytes=vmem_limit),
        cost_estimate=pl.CostEstimate(
            flops=flops,
            transcendentals=transcendentals,
            bytes_accessed=bytes_accessed),
    )(x_padded, *weights, vec_stack)

    return out_padded[:b_real, :output_dim]


# --------------------------------------------------------------- reference & init


def dnn_forward_ref(x, params, *, input_dim, num_hidden_layers, batch_norm):
    """Pure-JAX f32 reference mirroring the PyTorch module (training-mode BN)."""
    h = jnp.asarray(x, jnp.float32).reshape(-1, input_dim)
    idx = 0
    w, b = params[idx], params[idx + 1]
    idx += 2
    h = jnp.maximum(h @ w + b, 0.0)
    for _ in range(num_hidden_layers):
        w, b = params[idx], params[idx + 1]
        idx += 2
        h = h @ w + b
        if batch_norm:
            gamma, beta = params[idx], params[idx + 1]
            idx += 2
            mean = jnp.mean(h, axis=0, keepdims=True)
            var = jnp.mean((h - mean) ** 2, axis=0, keepdims=True)
            h = (h - mean) * jax.lax.rsqrt(var + _BN_EPS) * gamma + beta
        h = jnp.maximum(h, 0.0)
    w, b = params[idx], params[idx + 1]
    logits = h @ w + b
    return jax.nn.softmax(logits, axis=1)


def init_params(key, input_dim, output_dim, hidden_dim, num_hidden_layers, batch_norm):
    """Deterministic PyTorch-default-style init (uniform +-1/sqrt(fan_in))."""
    params = []

    def linear(key, fan_in, fan_out):
        kw, kb = jax.random.split(key)
        bound = 1.0 / jnp.sqrt(fan_in)
        w = jax.random.uniform(kw, (fan_in, fan_out), jnp.float32, -bound, bound)
        b = jax.random.uniform(kb, (1, fan_out), jnp.float32, -bound, bound)
        return w, b

    keys = jax.random.split(key, num_hidden_layers + 2)

    w, b = linear(keys[0], input_dim, hidden_dim)
    params += [w, b]
    for i in range(num_hidden_layers):
        w, b = linear(keys[1 + i], hidden_dim, hidden_dim)
        params += [w, b]
        if batch_norm:
            params += [jnp.ones((1, hidden_dim), jnp.float32),
                       jnp.zeros((1, hidden_dim), jnp.float32)]
    w, b = linear(keys[-1], hidden_dim, output_dim)
    params += [w, b]
    return params


# ------------------------------------------------------------------------------ main


if __name__ == "__main__":
    INPUT_DIM = 16
    OUTPUT_DIM = 8
    HIDDEN_DIM = 32
    NUM_HIDDEN_LAYERS = 2
    BATCH = 8

    key = jax.random.PRNGKey(0)
    kx, kp1, kp2 = jax.random.split(key, 3)
    x = jax.random.normal(kx, (BATCH, INPUT_DIM), jnp.float32)

    def run(params, batch_norm):
        def make_fwd(single_buffer):
            return jax.jit(functools.partial(
                dnn_forward,
                input_dim=INPUT_DIM,
                output_dim=OUTPUT_DIM,
                hidden_dim=HIDDEN_DIM,
                num_hidden_layers=NUM_HIDDEN_LAYERS,
                batch_norm=batch_norm,
                single_buffer_params=single_buffer))
        try:
            return jax.block_until_ready(make_fwd(True)(x, params))
        except Exception:
            # TODO(synk): drop this fallback once pl.Buffered(1) support is ubiquitous.
            return jax.block_until_ready(make_fwd(False)(x, params))

    for batch_norm, kp in ((True, kp1), (False, kp2)):
        params = init_params(kp, INPUT_DIM, OUTPUT_DIM, HIDDEN_DIM,
                             NUM_HIDDEN_LAYERS, batch_norm)

        out = run(params, batch_norm)
        ref = dnn_forward_ref(x, params, input_dim=INPUT_DIM,
                              num_hidden_layers=NUM_HIDDEN_LAYERS,
                              batch_norm=batch_norm)

        assert out.shape == (BATCH, OUTPUT_DIM)
        assert bool(jnp.all(jnp.isfinite(out)))
        # softmax rows sum to 1 (NR-refined reciprocal keeps this at f32 precision)
        assert jnp.allclose(jnp.sum(out, axis=1), 1.0, atol=1e-4), "row sums off"
        # matches the f32 reference up to bf16 weight/input matmul error
        assert jnp.allclose(out, ref, atol=4e-2), (
            f"mismatch (batch_norm={batch_norm}): "
            f"{float(jnp.max(jnp.abs(out - ref)))}")

    print("KERNEL_OK")
</pallas_src>

<mosaic_0001>
module attributes {stable_mosaic.version = 11 : i64} {
  func.func @kernel(%arg0: i32, %arg1: memref<8x128xbf16, #tpu.memory_space<vmem>>, %arg2: memref<128x128xbf16, #tpu.memory_space<vmem>>, %arg3: memref<128x128xbf16, #tpu.memory_space<vmem>>, %arg4: memref<128x128xbf16, #tpu.memory_space<vmem>>, %arg5: memref<128x128xbf16, #tpu.memory_space<vmem>>, %arg6: memref<8x128xf32, #tpu.memory_space<vmem>>, %arg7: memref<8x128xf32, #tpu.memory_space<vmem>>) attributes {dimension_semantics = [#tpu.dimension_semantics<parallel>], iteration_bounds = array<i64: 1>, scalar_prefetch = 0 : i64, scratch_operands = 0 : i64, tpu.core_type = #tpu.core_type<tc>, window_params = [{transform_indices = @transform_0, window_bounds = array<i64: 8, 128>}, {pipeline_mode = #tpu.pipeline_mode<synchronous>, transform_indices = @transform_1, window_bounds = array<i64: 128, 128>}, {pipeline_mode = #tpu.pipeline_mode<synchronous>, transform_indices = @transform_2, window_bounds = array<i64: 128, 128>}, {pipeline_mode = #tpu.pipeline_mode<synchronous>, transform_indices = @transform_3, window_bounds = array<i64: 128, 128>}, {pipeline_mode = #tpu.pipeline_mode<synchronous>, transform_indices = @transform_4, window_bounds = array<i64: 128, 128>}, {pipeline_mode = #tpu.pipeline_mode<synchronous>, transform_indices = @transform_5, window_bounds = array<i64: 8, 128>}, {transform_indices = @transform_6, window_bounds = array<i64: 8, 128>}]} {
    %0 = tpu.iota {dimensions = array<i32: 0>} : vector<8x1xi32>
    %c8_i32 = arith.constant 8 : i32
    %1 = vector.broadcast %c8_i32 : i32 to vector<8x1xi32>
    %2 = arith.cmpi slt, %0, %1 : vector<8x1xi32>
    %3 = arith.extui %2 : vector<8x1xi1> to vector<8x1xi32>
    %4 = arith.sitofp %3 : vector<8x1xi32> to vector<8x1xf32>
    %c0 = arith.constant 0 : index
    %c0_0 = arith.constant 0 : index
    %5 = vector.load %arg1[%c0, %c0_0] : memref<8x128xbf16, #tpu.memory_space<vmem>>, vector<8x128xbf16>
    %c0_1 = arith.constant 0 : index
    %c0_2 = arith.constant 0 : index
    %6 = vector.load %arg2[%c0_1, %c0_2] : memref<128x128xbf16, #tpu.memory_space<vmem>>, vector<128x128xbf16>
    %cst = arith.constant dense<0.000000e+00> : vector<8x128xf32>
    %7 = tpu.matmul %5, %6, %cst {dimension_numbers = #tpu.dot_dimension_numbers<[1], [0], [0], [1], [0, 0, 1, 1], [], []>} : vector<8x128xbf16>, vector<128x128xbf16>, vector<8x128xf32> -> vector<8x128xf32>
    %c0_3 = arith.constant 0 : index
    %c0_4 = arith.constant 0 : index
    %8 = vector.load %arg6[%c0_3, %c0_4] : memref<8x128xf32, #tpu.memory_space<vmem>>, vector<1x128xf32>
    %9 = vector.broadcast %8 : vector<1x128xf32> to vector<8x128xf32>
    %10 = arith.addf %7, %9 : vector<8x128xf32>
    %cst_5 = arith.constant 0.000000e+00 : f32
    %11 = vector.broadcast %cst_5 : f32 to vector<8x128xf32>
    %12 = arith.maximumf %10, %11 : vector<8x128xf32>
    %13 = arith.truncf %12 : vector<8x128xf32> to vector<8x128xbf16>
    %c0_6 = arith.constant 0 : index
    %c0_7 = arith.constant 0 : index
    %14 = vector.load %arg3[%c0_6, %c0_7] : memref<128x128xbf16, #tpu.memory_space<vmem>>, vector<128x128xbf16>
    %cst_8 = arith.constant dense<0.000000e+00> : vector<8x128xf32>
    %15 = tpu.matmul %13, %14, %cst_8 {dimension_numbers = #tpu.dot_dimension_numbers<[1], [0], [0], [1], [0, 0, 1, 1], [], []>} : vector<8x128xbf16>, vector<128x128xbf16>, vector<8x128xf32> -> vector<8x128xf32>
    %c1 = arith.constant 1 : index
    %c0_9 = arith.constant 0 : index
    %16 = vector.load %arg6[%c1, %c0_9] : memref<8x128xf32, #tpu.memory_space<vmem>>, vector<1x128xf32>
    %17 = vector.broadcast %16 : vector<1x128xf32> to vector<8x128xf32>
    %18 = arith.addf %15, %17 : vector<8x128xf32>
    %c2 = arith.constant 2 : index
    %c0_10 = arith.constant 0 : index
    %19 = vector.load %arg6[%c2, %c0_10] : memref<8x128xf32, #tpu.memory_space<vmem>>, vector<1x128xf32>
    %c3 = arith.constant 3 : index
    %c0_11 = arith.constant 0 : index
    %20 = vector.load %arg6[%c3, %c0_11] : memref<8x128xf32, #tpu.memory_space<vmem>>, vector<1x128xf32>
    %21 = vector.broadcast %4 : vector<8x1xf32> to vector<8x128xf32>
    %22 = arith.mulf %18, %21 : vector<8x128xf32>
    %cst_12 = arith.constant dense<0.000000e+00> : vector<128xf32>
    %23 = vector.multi_reduction <add>, %22, %cst_12 [0] : vector<8x128xf32> to vector<128xf32>
    %24 = vector.shape_cast %23 : vector<128xf32> to vector<1x128xf32>
    %25 = arith.mulf %22, %18 : vector<8x128xf32>
    %cst_13 = arith.constant dense<0.000000e+00> : vector<128xf32>
    %26 = vector.multi_reduction <add>, %25, %cst_13 [0] : vector<8x128xf32> to vector<128xf32>
    %27 = vector.shape_cast %26 : vector<128xf32> to vector<1x128xf32>
    %cst_14 = arith.constant 1.250000e-01 : f32
    %28 = vector.broadcast %cst_14 : f32 to vector<1x128xf32>
    %29 = arith.mulf %24, %28 : vector<1x128xf32>
    %cst_15 = arith.constant 1.250000e-01 : f32
    %30 = vector.broadcast %cst_15 : f32 to vector<1x128xf32>
    %31 = arith.mulf %27, %30 : vector<1x128xf32>
    %32 = arith.mulf %29, %29 : vector<1x128xf32>
    %33 = arith.subf %31, %32 : vector<1x128xf32>
    %cst_16 = arith.constant 0.000000e+00 : f32
    %34 = vector.broadcast %cst_16 : f32 to vector<1x128xf32>
    %35 = arith.maximumf %33, %34 : vector<1x128xf32>
    %36 = vector.broadcast %29 : vector<1x128xf32> to vector<8x128xf32>
    %37 = arith.subf %18, %36 : vector<8x128xf32>
    %cst_17 = arith.constant 9.99999974E-6 : f32
    %38 = vector.broadcast %cst_17 : f32 to vector<1x128xf32>
    %39 = arith.addf %35, %38 : vector<1x128xf32>
    %40 = math.rsqrt %39 : vector<1x128xf32>
    %41 = vector.broadcast %40 : vector<1x128xf32> to vector<8x128xf32>
    %42 = arith.mulf %37, %41 : vector<8x128xf32>
    %43 = vector.broadcast %19 : vector<1x128xf32> to vector<8x128xf32>
    %44 = arith.mulf %42, %43 : vector<8x128xf32>
    %45 = vector.broadcast %20 : vector<1x128xf32> to vector<8x128xf32>
    %46 = arith.addf %44, %45 : vector<8x128xf32>
    %cst_18 = arith.constant 0.000000e+00 : f32
    %47 = vector.broadcast %cst_18 : f32 to vector<8x128xf32>
    %48 = arith.maximumf %46, %47 : vector<8x128xf32>
    %49 = arith.truncf %48 : vector<8x128xf32> to vector<8x128xbf16>
    %c0_19 = arith.constant 0 : index
    %c0_20 = arith.constant 0 : index
    %50 = vector.load %arg4[%c0_19, %c0_20] : memref<128x128xbf16, #tpu.memory_space<vmem>>, vector<128x128xbf16>
    %cst_21 = arith.constant dense<0.000000e+00> : vector<8x128xf32>
    %51 = tpu.matmul %49, %50, %cst_21 {dimension_numbers = #tpu.dot_dimension_numbers<[1], [0], [0], [1], [0, 0, 1, 1], [], []>} : vector<8x128xbf16>, vector<128x128xbf16>, vector<8x128xf32> -> vector<8x128xf32>
    %c4 = arith.constant 4 : index
    %c0_22 = arith.constant 0 : index
    %52 = vector.load %arg6[%c4, %c0_22] : memref<8x128xf32, #tpu.memory_space<vmem>>, vector<1x128xf32>
    %53 = vector.broadcast %52 : vector<1x128xf32> to vector<8x128xf32>
    %54 = arith.addf %51, %53 : vector<8x128xf32>
    %c5 = arith.constant 5 : index
    %c0_23 = arith.constant 0 : index
    %55 = vector.load %arg6[%c5, %c0_23] : memref<8x128xf32, #tpu.memory_space<vmem>>, vector<1x128xf32>
    %c6 = arith.constant 6 : index
    %c0_24 = arith.constant 0 : index
    %56 = vector.load %arg6[%c6, %c0_24] : memref<8x128xf32, #tpu.memory_space<vmem>>, vector<1x128xf32>
    %57 = vector.broadcast %4 : vector<8x1xf32> to vector<8x128xf32>
    %58 = arith.mulf %54, %57 : vector<8x128xf32>
    %cst_25 = arith.constant dense<0.000000e+00> : vector<128xf32>
    %59 = vector.multi_reduction <add>, %58, %cst_25 [0] : vector<8x128xf32> to vector<128xf32>
    %60 = vector.shape_cast %59 : vector<128xf32> to vector<1x128xf32>
    %61 = arith.mulf %58, %54 : vector<8x128xf32>
    %cst_26 = arith.constant dense<0.000000e+00> : vector<128xf32>
    %62 = vector.multi_reduction <add>, %61, %cst_26 [0] : vector<8x128xf32> to vector<128xf32>
    %63 = vector.shape_cast %62 : vector<128xf32> to vector<1x128xf32>
    %cst_27 = arith.constant 1.250000e-01 : f32
    %64 = vector.broadcast %cst_27 : f32 to vector<1x128xf32>
    %65 = arith.mulf %60, %64 : vector<1x128xf32>
    %cst_28 = arith.constant 1.250000e-01 : f32
    %66 = vector.broadcast %cst_28 : f32 to vector<1x128xf32>
    %67 = arith.mulf %63, %66 : vector<1x128xf32>
    %68 = arith.mulf %65, %65 : vector<1x128xf32>
    %69 = arith.subf %67, %68 : vector<1x128xf32>
    %cst_29 = arith.constant 0.000000e+00 : f32
    %70 = vector.broadcast %cst_29 : f32 to vector<1x128xf32>
    %71 = arith.maximumf %69, %70 : vector<1x128xf32>
    %72 = vector.broadcast %65 : vector<1x128xf32> to vector<8x128xf32>
    %73 = arith.subf %54, %72 : vector<8x128xf32>
    %cst_30 = arith.constant 9.99999974E-6 : f32
    %74 = vector.broadcast %cst_30 : f32 to vector<1x128xf32>
    %75 = arith.addf %71, %74 : vector<1x128xf32>
    %76 = math.rsqrt %75 : vector<1x128xf32>
    %77 = vector.broadcast %76 : vector<1x128xf32> to vector<8x128xf32>
    %78 = arith.mulf %73, %77 : vector<8x128xf32>
    %79 = vector.broadcast %55 : vector<1x128xf32> to vector<8x128xf32>
    %80 = arith.mulf %78, %79 : vector<8x128xf32>
    %81 = vector.broadcast %56 : vector<1x128xf32> to vector<8x128xf32>
    %82 = arith.addf %80, %81 : vector<8x128xf32>
    %cst_31 = arith.constant 0.000000e+00 : f32
    %83 = vector.broadcast %cst_31 : f32 to vector<8x128xf32>
    %84 = arith.maximumf %82, %83 : vector<8x128xf32>
    %85 = arith.truncf %84 : vector<8x128xf32> to vector<8x128xbf16>
    %c0_32 = arith.constant 0 : index
    %c0_33 = arith.constant 0 : index
    %86 = vector.load %arg5[%c0_32, %c0_33] : memref<128x128xbf16, #tpu.memory_space<vmem>>, vector<128x128xbf16>
    %cst_34 = arith.constant dense<0.000000e+00> : vector<8x128xf32>
    %87 = tpu.matmul %85, %86, %cst_34 {dimension_numbers = #tpu.dot_dimension_numbers<[1], [0], [0], [1], [0, 0, 1, 1], [], []>} : vector<8x128xbf16>, vector<128x128xbf16>, vector<8x128xf32> -> vector<8x128xf32>
    %c7 = arith.constant 7 : index
    %c0_35 = arith.constant 0 : index
    %88 = vector.load %arg6[%c7, %c0_35] : memref<8x128xf32, #tpu.memory_space<vmem>>, vector<1x128xf32>
    %89 = vector.broadcast %88 : vector<1x128xf32> to vector<8x128xf32>
    %90 = arith.addf %87, %89 : vector<8x128xf32>
    %cst_36 = arith.constant dense<0xFF800000> : vector<8xf32>
    %91 = vector.multi_reduction <maximumf>, %90, %cst_36 [1] : vector<8x128xf32> to vector<8xf32>
    %92 = vector.shape_cast %91 : vector<8xf32> to vector<8x1xf32>
    %93 = vector.broadcast %92 : vector<8x1xf32> to vector<8x128xf32>
    %94 = arith.subf %90, %93 : vector<8x128xf32>
    %95 = math.exp %94 : vector<8x128xf32>
    %cst_37 = arith.constant dense<0.000000e+00> : vector<8xf32>
    %96 = vector.multi_reduction <add>, %95, %cst_37 [1] : vector<8x128xf32> to vector<8xf32>
    %97 = vector.shape_cast %96 : vector<8xf32> to vector<8x1xf32>
    %98 = tpu.reciprocal %97 {approx = true} : vector<8x1xf32> -> vector<8x1xf32>
    %99 = arith.mulf %97, %98 : vector<8x1xf32>
    %cst_38 = arith.constant 2.000000e+00 : f32
    %100 = vector.broadcast %cst_38 : f32 to vector<8x1xf32>
    %101 = arith.subf %100, %99 : vector<8x1xf32>
    %102 = arith.mulf %98, %101 : vector<8x1xf32>
    %103 = vector.broadcast %102 : vector<8x1xf32> to vector<8x128xf32>
    %104 = arith.mulf %95, %103 : vector<8x128xf32>
    %c0_39 = arith.constant 0 : index
    %c0_40 = arith.constant 0 : index
    %105 = vector.load %arg7[%c0_39, %c0_40] : memref<8x128xf32, #tpu.memory_space<vmem>>, vector<8x128xf32>
    tpu.vector_store %arg7[%c0_39, %c0_40], %104 {strides = array<i32>} : memref<8x128xf32, #tpu.memory_space<vmem>>, vector<8x128xf32>,
    return
  }
  func.func @transform_0(%arg0: i32) -> (i32, i32) {
    %c0_i32 = arith.constant 0 : i32
    %c0_i32_0 = arith.constant 0 : i32
    return %arg0, %c0_i32 : i32, i32
  }
  func.func @transform_1(%arg0: i32) -> (i32, i32) {
    %c0_i32 = arith.constant 0 : i32
    %c0_i32_0 = arith.constant 0 : i32
    %c0_i32_1 = arith.constant 0 : i32
    return %c0_i32, %c0_i32_0 : i32, i32
  }
  func.func @transform_2(%arg0: i32) -> (i32, i32) {
    %c0_i32 = arith.constant 0 : i32
    %c0_i32_0 = arith.constant 0 : i32
    %c0_i32_1 = arith.constant 0 : i32
    return %c0_i32, %c0_i32_0 : i32, i32
  }
  func.func @transform_3(%arg0: i32) -> (i32, i32) {
    %c0_i32 = arith.constant 0 : i32
    %c0_i32_0 = arith.constant 0 : i32
    %c0_i32_1 = arith.constant 0 : i32
    return %c0_i32, %c0_i32_0 : i32, i32
  }
  func.func @transform_4(%arg0: i32) -> (i32, i32) {
    %c0_i32 = arith.constant 0 : i32
    %c0_i32_0 = arith.constant 0 : i32
    %c0_i32_1 = arith.constant 0 : i32
    return %c0_i32, %c0_i32_0 : i32, i32
  }
  func.func @transform_5(%arg0: i32) -> (i32, i32) {
    %c0_i32 = arith.constant 0 : i32
    %c0_i32_0 = arith.constant 0 : i32
    %c0_i32_1 = arith.constant 0 : i32
    return %c0_i32, %c0_i32_0 : i32, i32
  }
  func.func @transform_6(%arg0: i32) -> (i32, i32) {
    %c0_i32 = arith.constant 0 : i32
    %c0_i32_0 = arith.constant 0 : i32
    return %arg0, %c0_i32 : i32, i32
  }
}

module attributes {stable_mosaic.version = 11 : i64} {
  func.func @kernel(%arg0: i32, %arg1: memref<8x128xbf16, #tpu.memory_space<vmem>>, %arg2: memref<128x128xbf16, #tpu.memory_space<vmem>>, %arg3: memref<128x128xbf16, #tpu.memory_space<vmem>>, %arg4: memref<128x128xbf16, #tpu.memory_space<vmem>>, %arg5: memref<128x128xbf16, #tpu.memory_space<vmem>>, %arg6: memref<8x128xf32, #tpu.memory_space<vmem>>, %arg7: memref<8x128xf32, #tpu.memory_space<vmem>>) attributes {dimension_semantics = [#tpu.dimension_semantics<parallel>], iteration_bounds = array<i64: 1>, scalar_prefetch = 0 : i64, scratch_operands = 0 : i64, tpu.core_type = #tpu.core_type<tc>, window_params = [{transform_indices = @transform_0, window_bounds = array<i64: 8, 128>}, {pipeline_mode = #tpu.pipeline_mode<synchronous>, transform_indices = @transform_1, window_bounds = array<i64: 128, 128>}, {pipeline_mode = #tpu.pipeline_mode<synchronous>, transform_indices = @transform_2, window_bounds = array<i64: 128, 128>}, {pipeline_mode = #tpu.pipeline_mode<synchronous>, transform_indices = @transform_3, window_bounds = array<i64: 128, 128>}, {pipeline_mode = #tpu.pipeline_mode<synchronous>, transform_indices = @transform_4, window_bounds = array<i64: 128, 128>}, {pipeline_mode = #tpu.pipeline_mode<synchronous>, transform_indices = @transform_5, window_bounds = array<i64: 8, 128>}, {transform_indices = @transform_6, window_bounds = array<i64: 8, 128>}]} {
    %0 = tpu.iota {dimensions = array<i32: 0>} : vector<8x1xi32>
    %c8_i32 = arith.constant 8 : i32
    %1 = vector.broadcast %c8_i32 : i32 to vector<8x1xi32>
    %2 = arith.cmpi slt, %0, %1 : vector<8x1xi32>
    %3 = arith.extui %2 : vector<8x1xi1> to vector<8x1xi32>
    %4 = arith.sitofp %3 : vector<8x1xi32> to vector<8x1xf32>
    %c0 = arith.constant 0 : index
    %c0_0 = arith.constant 0 : index
    %5 = vector.load %arg1[%c0, %c0_0] : memref<8x128xbf16, #tpu.memory_space<vmem>>, vector<8x128xbf16>
    %c0_1 = arith.constant 0 : index
    %c0_2 = arith.constant 0 : index
    %6 = vector.load %arg2[%c0_1, %c0_2] : memref<128x128xbf16, #tpu.memory_space<vmem>>, vector<128x128xbf16>
    %cst = arith.constant dense<0.000000e+00> : vector<8x128xf32>
    %7 = tpu.matmul %5, %6, %cst {dimension_numbers = #tpu.dot_dimension_numbers<[1], [0], [0], [1], [0, 0, 1, 1], [], []>} : vector<8x128xbf16>, vector<128x128xbf16>, vector<8x128xf32> -> vector<8x128xf32>
    %c0_3 = arith.constant 0 : index
    %c0_4 = arith.constant 0 : index
    %8 = vector.load %arg6[%c0_3, %c0_4] : memref<8x128xf32, #tpu.memory_space<vmem>>, vector<1x128xf32>
    %9 = vector.broadcast %8 : vector<1x128xf32> to vector<8x128xf32>
    %10 = arith.addf %7, %9 : vector<8x128xf32>
    %cst_5 = arith.constant 0.000000e+00 : f32
    %11 = vector.broadcast %cst_5 : f32 to vector<8x128xf32>
    %12 = arith.maximumf %10, %11 : vector<8x128xf32>
    %13 = arith.truncf %12 : vector<8x128xf32> to vector<8x128xbf16>
    %c0_6 = arith.constant 0 : index
    %c0_7 = arith.constant 0 : index
    %14 = vector.load %arg3[%c0_6, %c0_7] : memref<128x128xbf16, #tpu.memory_space<vmem>>, vector<128x128xbf16>
    %cst_8 = arith.constant dense<0.000000e+00> : vector<8x128xf32>
    %15 = tpu.matmul %13, %14, %cst_8 {dimension_numbers = #tpu.dot_dimension_numbers<[1], [0], [0], [1], [0, 0, 1, 1], [], []>} : vector<8x128xbf16>, vector<128x128xbf16>, vector<8x128xf32> -> vector<8x128xf32>
    %c1 = arith.constant 1 : index
    %c0_9 = arith.constant 0 : index
    %16 = vector.load %arg6[%c1, %c0_9] : memref<8x128xf32, #tpu.memory_space<vmem>>, vector<1x128xf32>
    %17 = vector.broadcast %16 : vector<1x128xf32> to vector<8x128xf32>
    %18 = arith.addf %15, %17 : vector<8x128xf32>
    %c2 = arith.constant 2 : index
    %c0_10 = arith.constant 0 : index
    %19 = vector.load %arg6[%c2, %c0_10] : memref<8x128xf32, #tpu.memory_space<vmem>>, vector<1x128xf32>
    %c3 = arith.constant 3 : index
    %c0_11 = arith.constant 0 : index
    %20 = vector.load %arg6[%c3, %c0_11] : memref<8x128xf32, #tpu.memory_space<vmem>>, vector<1x128xf32>
    %21 = vector.broadcast %4 : vector<8x1xf32> to vector<8x128xf32>
    %22 = arith.mulf %18, %21 : vector<8x128xf32>
    %cst_12 = arith.constant dense<0.000000e+00> : vector<128xf32>
    %23 = vector.multi_reduction <add>, %22, %cst_12 [0] : vector<8x128xf32> to vector<128xf32>
    %24 = vector.shape_cast %23 : vector<128xf32> to vector<1x128xf32>
    %25 = arith.mulf %22, %18 : vector<8x128xf32>
    %cst_13 = arith.constant dense<0.000000e+00> : vector<128xf32>
    %26 = vector.multi_reduction <add>, %25, %cst_13 [0] : vector<8x128xf32> to vector<128xf32>
    %27 = vector.shape_cast %26 : vector<128xf32> to vector<1x128xf32>
    %cst_14 = arith.constant 1.250000e-01 : f32
    %28 = vector.broadcast %cst_14 : f32 to vector<1x128xf32>
    %29 = arith.mulf %24, %28 : vector<1x128xf32>
    %cst_15 = arith.constant 1.250000e-01 : f32
    %30 = vector.broadcast %cst_15 : f32 to vector<1x128xf32>
    %31 = arith.mulf %27, %30 : vector<1x128xf32>
    %32 = arith.mulf %29, %29 : vector<1x128xf32>
    %33 = arith.subf %31, %32 : vector<1x128xf32>
    %cst_16 = arith.constant 0.000000e+00 : f32
    %34 = vector.broadcast %cst_16 : f32 to vector<1x128xf32>
    %35 = arith.maximumf %33, %34 : vector<1x128xf32>
    %36 = vector.broadcast %29 : vector<1x128xf32> to vector<8x128xf32>
    %37 = arith.subf %18, %36 : vector<8x128xf32>
    %cst_17 = arith.constant 9.99999974E-6 : f32
    %38 = vector.broadcast %cst_17 : f32 to vector<1x128xf32>
    %39 = arith.addf %35, %38 : vector<1x128xf32>
    %40 = math.rsqrt %39 : vector<1x128xf32>
    %41 = vector.broadcast %40 : vector<1x128xf32> to vector<8x128xf32>
    %42 = arith.mulf %37, %41 : vector<8x128xf32>
    %43 = vector.broadcast %19 : vector<1x128xf32> to vector<8x128xf32>
    %44 = arith.mulf %42, %43 : vector<8x128xf32>
    %45 = vector.broadcast %20 : vector<1x128xf32> to vector<8x128xf32>
    %46 = arith.addf %44, %45 : vector<8x128xf32>
    %cst_18 = arith.constant 0.000000e+00 : f32
    %47 = vector.broadcast %cst_18 : f32 to vector<8x128xf32>
    %48 = arith.maximumf %46, %47 : vector<8x128xf32>
    %49 = arith.truncf %48 : vector<8x128xf32> to vector<8x128xbf16>
    %c0_19 = arith.constant 0 : index
    %c0_20 = arith.constant 0 : index
    %50 = vector.load %arg4[%c0_19, %c0_20] : memref<128x128xbf16, #tpu.memory_space<vmem>>, vector<128x128xbf16>
    %cst_21 = arith.constant dense<0.000000e+00> : vector<8x128xf32>
    %51 = tpu.matmul %49, %50, %cst_21 {dimension_numbers = #tpu.dot_dimension_numbers<[1], [0], [0], [1], [0, 0, 1, 1], [], []>} : vector<8x128xbf16>, vector<128x128xbf16>, vector<8x128xf32> -> vector<8x128xf32>
    %c4 = arith.constant 4 : index
    %c0_22 = arith.constant 0 : index
    %52 = vector.load %arg6[%c4, %c0_22] : memref<8x128xf32, #tpu.memory_space<vmem>>, vector<1x128xf32>
    %53 = vector.broadcast %52 : vector<1x128xf32> to vector<8x128xf32>
    %54 = arith.addf %51, %53 : vector<8x128xf32>
    %c5 = arith.constant 5 : index
    %c0_23 = arith.constant 0 : index
    %55 = vector.load %arg6[%c5, %c0_23] : memref<8x128xf32, #tpu.memory_space<vmem>>, vector<1x128xf32>
    %c6 = arith.constant 6 : index
    %c0_24 = arith.constant 0 : index
    %56 = vector.load %arg6[%c6, %c0_24] : memref<8x128xf32, #tpu.memory_space<vmem>>, vector<1x128xf32>
    %57 = vector.broadcast %4 : vector<8x1xf32> to vector<8x128xf32>
    %58 = arith.mulf %54, %57 : vector<8x128xf32>
    %cst_25 = arith.constant dense<0.000000e+00> : vector<128xf32>
    %59 = vector.multi_reduction <add>, %58, %cst_25 [0] : vector<8x128xf32> to vector<128xf32>
    %60 = vector.shape_cast %59 : vector<128xf32> to vector<1x128xf32>
    %61 = arith.mulf %58, %54 : vector<8x128xf32>
    %cst_26 = arith.constant dense<0.000000e+00> : vector<128xf32>
    %62 = vector.multi_reduction <add>, %61, %cst_26 [0] : vector<8x128xf32> to vector<128xf32>
    %63 = vector.shape_cast %62 : vector<128xf32> to vector<1x128xf32>
    %cst_27 = arith.constant 1.250000e-01 : f32
    %64 = vector.broadcast %cst_27 : f32 to vector<1x128xf32>
    %65 = arith.mulf %60, %64 : vector<1x128xf32>
    %cst_28 = arith.constant 1.250000e-01 : f32
    %66 = vector.broadcast %cst_28 : f32 to vector<1x128xf32>
    %67 = arith.mulf %63, %66 : vector<1x128xf32>
    %68 = arith.mulf %65, %65 : vector<1x128xf32>
    %69 = arith.subf %67, %68 : vector<1x128xf32>
    %cst_29 = arith.constant 0.000000e+00 : f32
    %70 = vector.broadcast %cst_29 : f32 to vector<1x128xf32>
    %71 = arith.maximumf %69, %70 : vector<1x128xf32>
    %72 = vector.broadcast %65 : vector<1x128xf32> to vector<8x128xf32>
    %73 = arith.subf %54, %72 : vector<8x128xf32>
    %cst_30 = arith.constant 9.99999974E-6 : f32
    %74 = vector.broadcast %cst_30 : f32 to vector<1x128xf32>
    %75 = arith.addf %71, %74 : vector<1x128xf32>
    %76 = math.rsqrt %75 : vector<1x128xf32>
    %77 = vector.broadcast %76 : vector<1x128xf32> to vector<8x128xf32>
    %78 = arith.mulf %73, %77 : vector<8x128xf32>
    %79 = vector.broadcast %55 : vector<1x128xf32> to vector<8x128xf32>
    %80 = arith.mulf %78, %79 : vector<8x128xf32>
    %81 = vector.broadcast %56 : vector<1x128xf32> to vector<8x128xf32>
    %82 = arith.addf %80, %81 : vector<8x128xf32>
    %cst_31 = arith.constant 0.000000e+00 : f32
    %83 = vector.broadcast %cst_31 : f32 to vector<8x128xf32>
    %84 = arith.maximumf %82, %83 : vector<8x128xf32>
    %85 = arith.truncf %84 : vector<8x128xf32> to vector<8x128xbf16>
    %c0_32 = arith.constant 0 : index
    %c0_33 = arith.constant 0 : index
    %86 = vector.load %arg5[%c0_32, %c0_33] : memref<128x128xbf16, #tpu.memory_space<vmem>>, vector<128x128xbf16>
    %cst_34 = arith.constant dense<0.000000e+00> : vector<8x128xf32>
    %87 = tpu.matmul %85, %86, %cst_34 {dimension_numbers = #tpu.dot_dimension_numbers<[1], [0], [0], [1], [0, 0, 1, 1], [], []>} : vector<8x128xbf16>, vector<128x128xbf16>, vector<8x128xf32> -> vector<8x128xf32>
    %c7 = arith.constant 7 : index
    %c0_35 = arith.constant 0 : index
    %88 = vector.load %arg6[%c7, %c0_35] : memref<8x128xf32, #tpu.memory_space<vmem>>, vector<1x128xf32>
    %89 = vector.broadcast %88 : vector<1x128xf32> to vector<8x128xf32>
    %90 = arith.addf %87, %89 : vector<8x128xf32>
    %cst_36 = arith.constant dense<0xFF800000> : vector<8xf32>
    %91 = vector.multi_reduction <maximumf>, %90, %cst_36 [1] : vector<8x128xf32> to vector<8xf32>
    %92 = vector.shape_cast %91 : vector<8xf32> to vector<8x1xf32>
    %93 = vector.broadcast %92 : vector<8x1xf32> to vector<8x128xf32>
    %94 = arith.subf %90, %93 : vector<8x128xf32>
    %95 = math.exp %94 : vector<8x128xf32>
    %cst_37 = arith.constant dense<0.000000e+00> : vector<8xf32>
    %96 = vector.multi_reduction <add>, %95, %cst_37 [1] : vector<8x128xf32> to vector<8xf32>
    %97 = vector.shape_cast %96 : vector<8xf32> to vector<8x1xf32>
    %98 = tpu.reciprocal %97 {approx = true} : vector<8x1xf32> -> vector<8x1xf32>
    %99 = arith.mulf %97, %98 : vector<8x1xf32>
    %cst_38 = arith.constant 2.000000e+00 : f32
    %100 = vector.broadcast %cst_38 : f32 to vector<8x1xf32>
    %101 = arith.subf %100, %99 : vector<8x1xf32>
    %102 = arith.mulf %98, %101 : vector<8x1xf32>
    %103 = vector.broadcast %102 : vector<8x1xf32> to vector<8x128xf32>
    %104 = arith.mulf %95, %103 : vector<8x128xf32>
    %c0_39 = arith.constant 0 : index
    %c0_40 = arith.constant 0 : index
    %105 = vector.load %arg7[%c0_39, %c0_40] : memref<8x128xf32, #tpu.memory_space<vmem>>, vector<8x128xf32>
    tpu.vector_store %arg7[%c0_39, %c0_40], %104 {strides = array<i32>} : memref<8x128xf32, #tpu.memory_space<vmem>>, vector<8x128xf32>,
    return
  }
  func.func @transform_0(%arg0: i32) -> (i32, i32) {
    %c0_i32 = arith.constant 0 : i32
    %c0_i32_0 = arith.constant 0 : i32
    return %arg0, %c0_i32 : i32, i32
  }
  func.func @transform_1(%arg0: i32) -> (i32, i32) {
    %c0_i32 = arith.constant 0 : i32
    %c0_i32_0 = arith.constant 0 : i32
    %c0_i32_1 = arith.constant 0 : i32
    return %c0_i32, %c0_i32_0 : i32, i32
  }
  func.func @transform_2(%arg0: i32) -> (i32, i32) {
    %c0_i32 = arith.constant 0 : i32
    %c0_i32_0 = arith.constant 0 : i32
    %c0_i32_1 = arith.constant 0 : i32
    return %c0_i32, %c0_i32_0 : i32, i32
  }
  func.func @transform_3(%arg0: i32) -> (i32, i32) {
    %c0_i32 = arith.constant 0 : i32
    %c0_i32_0 = arith.constant 0 : i32
    %c0_i32_1 = arith.constant 0 : i32
    return %c0_i32, %c0_i32_0 : i32, i32
  }
  func.func @transform_4(%arg0: i32) -> (i32, i32) {
    %c0_i32 = arith.constant 0 : i32
    %c0_i32_0 = arith.constant 0 : i32
    %c0_i32_1 = arith.constant 0 : i32
    return %c0_i32, %c0_i32_0 : i32, i32
  }
  func.func @transform_5(%arg0: i32) -> (i32, i32) {
    %c0_i32 = arith.constant 0 : i32
    %c0_i32_0 = arith.constant 0 : i32
    %c0_i32_1 = arith.constant 0 : i32
    return %c0_i32, %c0_i32_0 : i32, i32
  }
  func.func @transform_6(%arg0: i32) -> (i32, i32) {
    %c0_i32 = arith.constant 0 : i32
    %c0_i32_0 = arith.constant 0 : i32
    return %arg0, %c0_i32 : i32, i32
  }
}

</mosaic_0001>

<llo_original>
// kernel: dnn_forward.1
$region0: #{dnn_forward.1}
  #allocation0 [shape = 'u32[]', space=smem, size = 0x4, offset = 0x4, fixed_abs, tag = 'smem constant byte address 0x4 - core index']
  #allocation1 [shape = 'u32[72,128]{1,0:T(1,128)}', space=vmem, size = 0x9000, scoped, tag = 'internal scratch']
  %s0 = inlined_call_operand.vmem [shape: bf16[8,128], index: 0, kind: input, shape index: {}]
  %s1 = inlined_call_operand.vmem [shape: bf16[128,128], index: 1, kind: input, shape index: {}]
  %s2 = inlined_call_operand.vmem [shape: bf16[128,128], index: 2, kind: input, shape index: {}]
  %s3 = inlined_call_operand.vmem [shape: bf16[128,128], index: 3, kind: input, shape index: {}]
  %s4 = inlined_call_operand.vmem [shape: bf16[128,128], index: 4, kind: input, shape index: {}]
  %s5 = inlined_call_operand.vmem [shape: f32[8,128], index: 5, kind: input, shape index: {}]
  %s6 = inlined_call_operand.hbm [shape: f32[8,128], index: 6, kind: output, shape index: {}]
  %s7 = sld [smem:[#allocation0]]
  $region34: #{dnn_forward.1} parent=0
    _
  %s9 = ssub.s32 1, %s7
  %s10 = scalar_select 0, %s9, %s7
  $region1: #{dnn_forward.1} parent=0
    #allocation2 [shape = 'u8[4096]{0}', space=vmem, size = 0x1000, scoped, tag = 'output window, operand 0, single buffered']
    #allocation3 [shape = 's32[1]{0}', space=sflag, size = 0x4, scoped, tag = 'scoped memory for dnn_forward.1']
    %11 = vsyncpa [#allocation3], 0
    // Predicated region
    $region2: #{dnn_forward.1} parent=1 // pred_check
      _
    $region3: #{dnn_forward.1} parent=1 // pred_check_branch
      %13 = sbr.rel (0) target = $region5
    $region4: #{dnn_forward.1} parent=1 // pred_region
      _
    $region5: #{dnn_forward.1} parent=1 // pred_fallthru
      _
    // Predicated region
    $region6: #{dnn_forward.1} parent=1 // pred_check
      _
    $region7: #{dnn_forward.1} parent=1 // pred_check_branch
      %15 = sbr.rel (0) target = $region9
    $region8: #{dnn_forward.1} parent=1 // pred_region
      _
    $region9: #{dnn_forward.1} parent=1 // pred_fallthru
      _
    // Predicated region
    $region10: #{dnn_forward.1} parent=1 // pred_check
      _
    $region11: #{dnn_forward.1} parent=1 // pred_check_branch
      %17 = sbr.rel (0) target = $region13
    $region12: #{dnn_forward.1} parent=1 // pred_region
      _
    $region13: #{dnn_forward.1} parent=1 // pred_fallthru
      _
    // Predicated region
    $region14: #{dnn_forward.1} parent=1 // pred_check
      _
    $region15: #{dnn_forward.1} parent=1 // pred_check_branch
      %19 = sbr.rel (0) target = $region17
    $region16: #{dnn_forward.1} parent=1 // pred_region
      _
    $region17: #{dnn_forward.1} parent=1 // pred_fallthru
      _
    // Predicated region
    $region18: #{dnn_forward.1} parent=1 // pred_check
      _
    $region19: #{dnn_forward.1} parent=1 // pred_check_branch
      %21 = sbr.rel (0) target = $region21
    $region20: #{dnn_forward.1} parent=1 // pred_region
      _
    $region21: #{dnn_forward.1} parent=1 // pred_fallthru
      _
    // Predicated region
    $region22: #{dnn_forward.1} parent=1 // pred_check
      _
    $region23: #{dnn_forward.1} parent=1 // pred_check_branch
      %23 = sbr.rel (0) target = $region25
    $region24: #{dnn_forward.1} parent=1 // pred_region
      _
    $region25: #{dnn_forward.1} parent=1 // pred_fallthru
      _
    %v24 = vlaneseq
    %v25 = vshrl.u32 %v24, 7
    %vm26 = vcmp.lt.s32.totalorder %v25, 8
    %v27 = vsel %vm26, 1, 0
    %v28 = vcvt.s32.f32 %v27
    %v29 = vld [vmem:[%s0] sm:$0xf]
    %v30 = vld [vmem:[%s1] sm:$0xf]
    %v31 = vld [vmem:[%s1 + $0x4] sm:$0xf]
    %v32 = vld [vmem:[%s1 + $0x8] sm:$0xf]
    %v33 = vld [vmem:[%s1 + $0xc] sm:$0xf]
    %v34 = vld [vmem:[%s1 + $0x10] sm:$0xf]
    %v35 = vld [vmem:[%s1 + $0x14] sm:$0xf]
    %v36 = vld [vmem:[%s1 + $0x18] sm:$0xf]
    %v37 = vld [vmem:[%s1 + $0x1c] sm:$0xf]
    %v38 = vld [vmem:[%s1 + $0x20] sm:$0xf]
    %v39 = vld [vmem:[%s1 + $0x24] sm:$0xf]
    %v40 = vld [vmem:[%s1 + $0x28] sm:$0xf]
    %v41 = vld [vmem:[%s1 + $0x2c] sm:$0xf]
    %v42 = vld [vmem:[%s1 + $0x30] sm:$0xf]
    %v43 = vld [vmem:[%s1 + $0x34] sm:$0xf]
    %v44 = vld [vmem:[%s1 + $0x38] sm:$0xf]
    %v45 = vld [vmem:[%s1 + $0x3c] sm:$0xf]
    %v46 = vld [vmem:[%s5] sm:$0x1]
    %v47 = vperm.slane %v46, 0
    %v64 = vunpack.c.l.b16 %v30
    %v65 = vunpack.c.l.b16 %v31
    %v66 = vunpack.c.l.b16 %v32
    %v67 = vunpack.c.l.b16 %v33
    %v68 = vunpack.c.l.b16 %v34
    %v69 = vunpack.c.l.b16 %v35
    %v70 = vunpack.c.l.b16 %v36
    %v71 = vunpack.c.l.b16 %v37
    %v72 = vunpack.c.l.b16 %v38
    %v73 = vunpack.c.l.b16 %v39
    %v74 = vunpack.c.l.b16 %v40
    %v75 = vunpack.c.l.b16 %v41
    %v76 = vunpack.c.l.b16 %v42
    %v77 = vunpack.c.l.b16 %v43
    %v78 = vunpack.c.l.b16 %v44
    %v79 = vunpack.c.l.b16 %v45
    %v80 = vpack.c.b16 %v65, %v64
    %v81 = vpack.c.b16 %v67, %v66
    %v82 = vpack.c.b16 %v69, %v68
    %v83 = vpack.c.b16 %v71, %v70
    %v84 = vpack.c.b16 %v73, %v72
    %v85 = vpack.c.b16 %v75, %v74
    %v86 = vpack.c.b16 %v77, %v76
    %v87 = vpack.c.b16 %v79, %v78
    %96 = vmatpush.bf16.msra.mxu0 %v87
    %97 = vmatpush.bf16.msra.mxu0 %v86
    %98 = vmatpush.bf16.msra.mxu0 %v85
    %99 = vmatpush.bf16.msra.mxu0 %v84
    %100 = vmatpush.bf16.msra.mxu0 %v83
    %101 = vmatpush.bf16.msra.mxu0 %v82
    %102 = vmatpush.bf16.msra.mxu0 %v81
    %103 = vmatpush.bf16.msra.mxu0 %v80
    %104 = vmatmul.bf16.gmra.mxu0 %v29
    %v105 = vpop.f32.mrf.mxu0
    %v106 = vadd.f32 %v47, %v105
    %v107 = vpop.f32.mrf.mxu0
    %108 = vdwg.mxu0
    %v109 = vmax.f32 %v106, 0.0
    %v110 = vpack.c.bf16 %v109, %v109
    %v111 = vld [vmem:[%s2] sm:$0xf]
    %v112 = vld [vmem:[%s2 + $0x4] sm:$0xf]
    %v113 = vld [vmem:[%s2 + $0x8] sm:$0xf]
    %v114 = vld [vmem:[%s2 + $0xc] sm:$0xf]
    %v115 = vld [vmem:[%s2 + $0x10] sm:$0xf]
    %v116 = vld [vmem:[%s2 + $0x14] sm:$0xf]
    %v117 = vld [vmem:[%s2 + $0x18] sm:$0xf]
    %v118 = vld [vmem:[%s2 + $0x1c] sm:$0xf]
    %v119 = vld [vmem:[%s2 + $0x20] sm:$0xf]
    %v120 = vld [vmem:[%s2 + $0x24] sm:$0xf]
    %v121 = vld [vmem:[%s2 + $0x28] sm:$0xf]
    %v122 = vld [vmem:[%s2 + $0x2c] sm:$0xf]
    %v123 = vld [vmem:[%s2 + $0x30] sm:$0xf]
    %v124 = vld [vmem:[%s2 + $0x34] sm:$0xf]
    %v125 = vld [vmem:[%s2 + $0x38] sm:$0xf]
    %v126 = vld [vmem:[%s2 + $0x3c] sm:$0xf]
    %v127 = vld [vmem:[%s5 + $0x1] sm:$0x1]
    %v128 = vperm.slane %v127, 0
    %v145 = vunpack.c.l.b16 %v111
    %v146 = vunpack.c.l.b16 %v112
    %v147 = vunpack.c.l.b16 %v113
    %v148 = vunpack.c.l.b16 %v114
    %v149 = vunpack.c.l.b16 %v115
    %v150 = vunpack.c.l.b16 %v116
    %v151 = vunpack.c.l.b16 %v117
    %v152 = vunpack.c.l.b16 %v118
    %v153 = vunpack.c.l.b16 %v119
    %v154 = vunpack.c.l.b16 %v120
    %v155 = vunpack.c.l.b16 %v121
    %v156 = vunpack.c.l.b16 %v122
    %v157 = vunpack.c.l.b16 %v123
    %v158 = vunpack.c.l.b16 %v124
    %v159 = vunpack.c.l.b16 %v125
    %v160 = vunpack.c.l.b16 %v126
    %v161 = vpack.c.b16 %v146, %v145
    %v162 = vpack.c.b16 %v148, %v147
    %v163 = vpack.c.b16 %v150, %v149
    %v164 = vpack.c.b16 %v152, %v151
    %v165 = vpack.c.b16 %v154, %v153
    %v166 = vpack.c.b16 %v156, %v155
    %v167 = vpack.c.b16 %v158, %v157
    %v168 = vpack.c.b16 %v160, %v159
    %177 = vmatpush.bf16.msra.mxu0 %v168
    %178 = vmatpush.bf16.msra.mxu0 %v167
    %179 = vmatpush.bf16.msra.mxu0 %v166
    %180 = vmatpush.bf16.msra.mxu0 %v165
    %181 = vmatpush.bf16.msra.mxu0 %v164
    %182 = vmatpush.bf16.msra.mxu0 %v163
    %183 = vmatpush.bf16.msra.mxu0 %v162
    %184 = vmatpush.bf16.msra.mxu0 %v161
    %185 = vmatmul.bf16.gmra.mxu0 %v110
    %v186 = vpop.f32.mrf.mxu0
    %v187 = vadd.f32 %v128, %v186
    %v188 = vpop.f32.mrf.mxu0
    %189 = vdwg.mxu0
    %v190 = vld [vmem:[%s5 + $0x2] sm:$0x1]
    %v191 = vld [vmem:[%s5 + $0x3] sm:$0x1]
    %v192 = vmul.f32 %v187, %v28
    %v193 = vrot.slane %v192, 4
    %v194 = vadd.f32 %v192, %v193
    %v195 = vrot.slane %v194, 2
    %v196 = vadd.f32 %v194, %v195
    %v197 = vrot.slane %v196, 1
    %v198 = vadd.f32 %v196, %v197
    %v199 = vmul.f32 %v192, %v187
    %v200 = vrot.slane %v199, 4
    %v201 = vadd.f32 %v199, %v200
    %v202 = vrot.slane %v201, 2
    %v203 = vadd.f32 %v201, %v202
    %v204 = vrot.slane %v203, 1
    %v205 = vadd.f32 %v203, %v204
    %v206 = vmul.f32 %v198, 0.125
    %v207 = vmul.f32 %v205, 0.125
    %v208 = vmul.f32 %v206, %v206
    %v209 = vsub.f32 %v207, %v208
    %v210 = vmax.f32 %v209, 0.0
    %v211 = vsub.f32 %v187, %v206
    %v212 = vadd.f32 %v210, 1e-05
    %v213 = vrsqrt.pop %v212
    %v214 = vmul.f32 %v213, %v212
    %v215 = vmul.f32 %v214, %v213
    %v216 = vmul.f32 0.5, %v215
    %v217 = vsub.f32 1.5, %v216
    %v218 = vmul.f32 %v213, %v217
    %vm219 = vweird.f32 %v212
    %vm220 = vweird.f32 %v213
    %vm221 = vmor %vm219, %vm220
    %v222 = vsel %vm221, %v213, %v218
    %v223 = vmul.f32 %v211, %v222
    %v224 = vperm.slane %v190, 0
    %v225 = vmul.f32 %v223, %v224
    %v226 = vperm.slane %v191, 0
    %v227 = vadd.f32 %v225, %v226
    %v228 = vmax.f32 %v227, 0.0
    %v229 = vpack.c.bf16 %v228, %v228
    %v230 = vld [vmem:[%s3] sm:$0xf]
    %v231 = vld [vmem:[%s3 + $0x4] sm:$0xf]
    %v232 = vld [vmem:[%s3 + $0x8] sm:$0xf]
    %v233 = vld [vmem:[%s3 + $0xc] sm:$0xf]
    %v234 = vld [vmem:[%s3 + $0x10] sm:$0xf]
    %v235 = vld [vmem:[%s3 + $0x14] sm:$0xf]
    %v236 = vld [vmem:[%s3 + $0x18] sm:$0xf]
    %v237 = vld [vmem:[%s3 + $0x1c] sm:$0xf]
    %v238 = vld [vmem:[%s3 + $0x20] sm:$0xf]
    %v239 = vld [vmem:[%s3 + $0x24] sm:$0xf]
    %v240 = vld [vmem:[%s3 + $0x28] sm:$0xf]
    %v241 = vld [vmem:[%s3 + $0x2c] sm:$0xf]
    %v242 = vld [vmem:[%s3 + $0x30] sm:$0xf]
    %v243 = vld [vmem:[%s3 + $0x34] sm:$0xf]
    %v244 = vld [vmem:[%s3 + $0x38] sm:$0xf]
    %v245 = vld [vmem:[%s3 + $0x3c] sm:$0xf]
    %v246 = vld [vmem:[%s5 + $0x4] sm:$0x1]
    %v247 = vperm.slane %v246, 0
    %v264 = vunpack.c.l.b16 %v230
    %v265 = vunpack.c.l.b16 %v231
    %v266 = vunpack.c.l.b16 %v232
    %v267 = vunpack.c.l.b16 %v233
    %v268 = vunpack.c.l.b16 %v234
    %v269 = vunpack.c.l.b16 %v235
    %v270 = vunpack.c.l.b16 %v236
    %v271 = vunpack.c.l.b16 %v237
    %v272 = vunpack.c.l.b16 %v238
    %v273 = vunpack.c.l.b16 %v239
    %v274 = vunpack.c.l.b16 %v240
    %v275 = vunpack.c.l.b16 %v241
    %v276 = vunpack.c.l.b16 %v242
    %v277 = vunpack.c.l.b16 %v243
    %v278 = vunpack.c.l.b16 %v244
    %v279 = vunpack.c.l.b16 %v245
    %v280 = vpack.c.b16 %v265, %v264
    %v281 = vpack.c.b16 %v267, %v266
    %v282 = vpack.c.b16 %v269, %v268
    %v283 = vpack.c.b16 %v271, %v270
    %v284 = vpack.c.b16 %v273, %v272
    %v285 = vpack.c.b16 %v275, %v274
    %v286 = vpack.c.b16 %v277, %v276
    %v287 = vpack.c.b16 %v279, %v278
    %296 = vmatpush.bf16.msra.mxu0 %v287
    %297 = vmatpush.bf16.msra.mxu0 %v286
    %298 = vmatpush.bf16.msra.mxu0 %v285
    %299 = vmatpush.bf16.msra.mxu0 %v284
    %300 = vmatpush.bf16.msra.mxu0 %v283
    %301 = vmatpush.bf16.msra.mxu0 %v282
    %302 = vmatpush.bf16.msra.mxu0 %v281
    %303 = vmatpush.bf16.msra.mxu0 %v280
    %304 = vmatmul.bf16.gmra.mxu0 %v229
    %v305 = vpop.f32.mrf.mxu0
    %v306 = vadd.f32 %v247, %v305
    %v307 = vpop.f32.mrf.mxu0
    %308 = vdwg.mxu0
    %v309 = vld [vmem:[%s5 + $0x5] sm:$0x1]
    %v310 = vld [vmem:[%s5 + $0x6] sm:$0x1]
    %v311 = vmul.f32 %v306, %v28
    %v312 = vrot.slane %v311, 4
    %v313 = vadd.f32 %v311, %v312
    %v314 = vrot.slane %v313, 2
    %v315 = vadd.f32 %v313, %v314
    %v316 = vrot.slane %v315, 1
    %v317 = vadd.f32 %v315, %v316
    %v318 = vmul.f32 %v311, %v306
    %v319 = vrot.slane %v318, 4
    %v320 = vadd.f32 %v318, %v319
    %v321 = vrot.slane %v320, 2
    %v322 = vadd.f32 %v320, %v321
    %v323 = vrot.slane %v322, 1
    %v324 = vadd.f32 %v322, %v323
    %v325 = vmul.f32 %v317, 0.125
    %v326 = vmul.f32 %v324, 0.125
    %v327 = vmul.f32 %v325, %v325
    %v328 = vsub.f32 %v326, %v327
    %v329 = vmax.f32 %v328, 0.0
    %v330 = vsub.f32 %v306, %v325
    %v331 = vadd.f32 %v329, 1e-05
    %v332 = vrsqrt.pop %v331
    %v333 = vmul.f32 %v332, %v331
    %v334 = vmul.f32 %v333, %v332
    %v335 = vmul.f32 0.5, %v334
    %v336 = vsub.f32 1.5, %v335
    %v337 = vmul.f32 %v332, %v336
    %vm338 = vweird.f32 %v331
    %vm339 = vweird.f32 %v332
    %vm340 = vmor %vm338, %vm339
    %v341 = vsel %vm340, %v332, %v337
    %v342 = vmul.f32 %v330, %v341
    %v343 = vperm.slane %v309, 0
    %v344 = vmul.f32 %v342, %v343
    %v345 = vperm.slane %v310, 0
    %v346 = vadd.f32 %v344, %v345
    %v347 = vmax.f32 %v346, 0.0
    %v348 = vpack.c.bf16 %v347, %v347
    %v349 = vld [vmem:[%s4] sm:$0xf]
    %v350 = vld [vmem:[%s4 + $0x4] sm:$0xf]
    %v351 = vld [vmem:[%s4 + $0x8] sm:$0xf]
    %v352 = vld [vmem:[%s4 + $0xc] sm:$0xf]
    %v353 = vld [vmem:[%s4 + $0x10] sm:$0xf]
    %v354 = vld [vmem:[%s4 + $0x14] sm:$0xf]
    %v355 = vld [vmem:[%s4 + $0x18] sm:$0xf]
    %v356 = vld [vmem:[%s4 + $0x1c] sm:$0xf]
    %v357 = vld [vmem:[%s4 + $0x20] sm:$0xf]
    %v358 = vld [vmem:[%s4 + $0x24] sm:$0xf]
    %v359 = vld [vmem:[%s4 + $0x28] sm:$0xf]
    %v360 = vld [vmem:[%s4 + $0x2c] sm:$0xf]
    %v361 = vld [vmem:[%s4 + $0x30] sm:$0xf]
    %v362 = vld [vmem:[%s4 + $0x34] sm:$0xf]
    %v363 = vld [vmem:[%s4 + $0x38] sm:$0xf]
    %v364 = vld [vmem:[%s4 + $0x3c] sm:$0xf]
    %v365 = vld [vmem:[%s5 + $0x7] sm:$0x1]
    %v366 = vperm.slane %v365, 0
    %v383 = vunpack.c.l.b16 %v349
    %v384 = vunpack.c.l.b16 %v350
    %v385 = vunpack.c.l.b16 %v351
    %v386 = vunpack.c.l.b16 %v352
    %v387 = vunpack.c.l.b16 %v353
    %v388 = vunpack.c.l.b16 %v354
    %v389 = vunpack.c.l.b16 %v355
    %v390 = vunpack.c.l.b16 %v356
    %v391 = vunpack.c.l.b16 %v357
    %v392 = vunpack.c.l.b16 %v358
    %v393 = vunpack.c.l.b16 %v359
    %v394 = vunpack.c.l.b16 %v360
    %v395 = vunpack.c.l.b16 %v361
    %v396 = vunpack.c.l.b16 %v362
    %v397 = vunpack.c.l.b16 %v363
    %v398 = vunpack.c.l.b16 %v364
    %v399 = vpack.c.b16 %v384, %v383
    %v400 = vpack.c.b16 %v386, %v385
    %v401 = vpack.c.b16 %v388, %v387
    %v402 = vpack.c.b16 %v390, %v389
    %v403 = vpack.c.b16 %v392, %v391
    %v404 = vpack.c.b16 %v394, %v393
    %v405 = vpack.c.b16 %v396, %v395
    %v406 = vpack.c.b16 %v398, %v397
    %415 = vmatpush.bf16.msra.mxu0 %v406
    %416 = vmatpush.bf16.msra.mxu0 %v405
    %417 = vmatpush.bf16.msra.mxu0 %v404
    %418 = vmatpush.bf16.msra.mxu0 %v403
    %419 = vmatpush.bf16.msra.mxu0 %v402
    %420 = vmatpush.bf16.msra.mxu0 %v401
    %421 = vmatpush.bf16.msra.mxu0 %v400
    %422 = vmatpush.bf16.msra.mxu0 %v399
    %423 = vmatmul.bf16.gmra.mxu0 %v348
    %v424 = vpop.f32.mrf.mxu0
    %v425 = vadd.f32 %v366, %v424
    %v426 = vpop.f32.mrf.mxu0
    %427 = vdwg.mxu0
    %428 = vmax.xlane.f32.xlu0 %v425
    %v429 = vpop.xlane.xlu0 %428
    %v430 = vsub.f32 %v425, %v429
    %v431 = vmul.f32 %v430, 1.442695
    %v432 = vpow.pop %v431
    %433 = vadd.xlane.f32.xlu0 %v432
    %v434 = vpop.xlane.xlu0 %433
    %v435 = vrcp.pop %v434
    %v436 = vmul.f32 %v434, %v435
    %v437 = vsub.f32 2.0, %v436
    %v438 = vmul.f32 %v435, %v437
    %v439 = vmul.f32 %v432, %v438
    %440 = vst [vmem:[#allocation2] sm:$0xff] %v439
    // Predicated region
    $region26: #{dnn_forward.1} parent=1 // pred_check
      _
    $region27: #{dnn_forward.1} parent=1 // pred_check_branch
      %442 = sbr.rel (0) target = $region29
    $region28: #{dnn_forward.1} parent=1 // pred_region
      %444 = vsyncadd [#allocation3], 0
      %s446 = sshll.u32 [#allocation2], 4
      %s447 = int_to_ptr.vmem [resolvable:$true] %s446
      %s448 = sshll.u32 %s6, 4
      %s449 = int_to_ptr.hbm [resolvable:$true] %s448
      %451 = dma.vmem_to_hbm [thread:$0]  %s447, 128, %s449, [#allocation3]
    $region29: #{dnn_forward.1} parent=1 // pred_fallthru
      _
    // Predicated region
    $region30: #{dnn_forward.1} parent=1 // pred_check
      _
    $region31: #{dnn_forward.1} parent=1 // pred_check_branch
      %453 = sbr.rel (0) target = $region33
    $region32: #{dnn_forward.1} parent=1 // pred_region
      %455 = dma.done [#allocation3], 128
    $region33: #{dnn_forward.1} parent=1 // pred_fallthru
      _
    %456 = vsyncpa [#allocation3], 1

// kernel: dnn_forward.1
$region0: #{dnn_forward.1}
  #allocation0 [shape = 'u32[]', space=smem, size = 0x4, offset = 0x4, fixed_abs, tag = 'smem constant byte address 0x4 - core index']
  #allocation1 [shape = 'u32[72,128]{1,0:T(1,128)}', space=vmem, size = 0x9000, scoped, tag = 'internal scratch']
  %s0 = inlined_call_operand.vmem [shape: bf16[8,128], index: 0, kind: input, shape index: {}]
  %s1 = inlined_call_operand.vmem [shape: bf16[128,128], index: 1, kind: input, shape index: {}]
  %s2 = inlined_call_operand.vmem [shape: bf16[128,128], index: 2, kind: input, shape index: {}]
  %s3 = inlined_call_operand.vmem [shape: bf16[128,128], index: 3, kind: input, shape index: {}]
  %s4 = inlined_call_operand.vmem [shape: bf16[128,128], index: 4, kind: input, shape index: {}]
  %s5 = inlined_call_operand.vmem [shape: f32[8,128], index: 5, kind: input, shape index: {}]
  %s6 = inlined_call_operand.hbm [shape: f32[8,128], index: 6, kind: output, shape index: {}]
  %s7 = sld [smem:[#allocation0]]
  $region34: #{dnn_forward.1} parent=0
    _
  %s9 = ssub.s32 1, %s7
  %s10 = scalar_select 0, %s9, %s7
  $region1: #{dnn_forward.1} parent=0
    #allocation2 [shape = 'u8[4096]{0}', space=vmem, size = 0x1000, scoped, tag = 'output window, operand 0, single buffered']
    #allocation3 [shape = 's32[1]{0}', space=sflag, size = 0x4, scoped, tag = 'scoped memory for dnn_forward.1']
    %11 = vsyncpa [#allocation3], 0
    // Predicated region
    $region2: #{dnn_forward.1} parent=1 // pred_check
      _
    $region3: #{dnn_forward.1} parent=1 // pred_check_branch
      %13 = sbr.rel (0) target = $region5
    $region4: #{dnn_forward.1} parent=1 // pred_region
      _
    $region5: #{dnn_forward.1} parent=1 // pred_fallthru
      _
    // Predicated region
    $region6: #{dnn_forward.1} parent=1 // pred_check
      _
    $region7: #{dnn_forward.1} parent=1 // pred_check_branch
      %15 = sbr.rel (0) target = $region9
    $region8: #{dnn_forward.1} parent=1 // pred_region
      _
    $region9: #{dnn_forward.1} parent=1 // pred_fallthru
      _
    // Predicated region
    $region10: #{dnn_forward.1} parent=1 // pred_check
      _
    $region11: #{dnn_forward.1} parent=1 // pred_check_branch
      %17 = sbr.rel (0) target = $region13
    $region12: #{dnn_forward.1} parent=1 // pred_region
      _
    $region13: #{dnn_forward.1} parent=1 // pred_fallthru
      _
    // Predicated region
    $region14: #{dnn_forward.1} parent=1 // pred_check
      _
    $region15: #{dnn_forward.1} parent=1 // pred_check_branch
      %19 = sbr.rel (0) target = $region17
    $region16: #{dnn_forward.1} parent=1 // pred_region
      _
    $region17: #{dnn_forward.1} parent=1 // pred_fallthru
      _
    // Predicated region
    $region18: #{dnn_forward.1} parent=1 // pred_check
      _
    $region19: #{dnn_forward.1} parent=1 // pred_check_branch
      %21 = sbr.rel (0) target = $region21
    $region20: #{dnn_forward.1} parent=1 // pred_region
      _
    $region21: #{dnn_forward.1} parent=1 // pred_fallthru
      _
    // Predicated region
    $region22: #{dnn_forward.1} parent=1 // pred_check
      _
    $region23: #{dnn_forward.1} parent=1 // pred_check_branch
      %23 = sbr.rel (0) target = $region25
    $region24: #{dnn_forward.1} parent=1 // pred_region
      _
    $region25: #{dnn_forward.1} parent=1 // pred_fallthru
      _
    %v24 = vlaneseq
    %v25 = vshrl.u32 %v24, 7
    %vm26 = vcmp.lt.s32.totalorder %v25, 8
    %v27 = vsel %vm26, 1, 0
    %v28 = vcvt.s32.f32 %v27
    %v29 = vld [vmem:[%s0] sm:$0xf]
    %v30 = vld [vmem:[%s1] sm:$0xf]
    %v31 = vld [vmem:[%s1 + $0x4] sm:$0xf]
    %v32 = vld [vmem:[%s1 + $0x8] sm:$0xf]
    %v33 = vld [vmem:[%s1 + $0xc] sm:$0xf]
    %v34 = vld [vmem:[%s1 + $0x10] sm:$0xf]
    %v35 = vld [vmem:[%s1 + $0x14] sm:$0xf]
    %v36 = vld [vmem:[%s1 + $0x18] sm:$0xf]
    %v37 = vld [vmem:[%s1 + $0x1c] sm:$0xf]
    %v38 = vld [vmem:[%s1 + $0x20] sm:$0xf]
    %v39 = vld [vmem:[%s1 + $0x24] sm:$0xf]
    %v40 = vld [vmem:[%s1 + $0x28] sm:$0xf]
    %v41 = vld [vmem:[%s1 + $0x2c] sm:$0xf]
    %v42 = vld [vmem:[%s1 + $0x30] sm:$0xf]
    %v43 = vld [vmem:[%s1 + $0x34] sm:$0xf]
    %v44 = vld [vmem:[%s1 + $0x38] sm:$0xf]
    %v45 = vld [vmem:[%s1 + $0x3c] sm:$0xf]
    %v46 = vld [vmem:[%s5] sm:$0x1]
    %v47 = vperm.slane %v46, 0
    %v64 = vunpack.c.l.b16 %v30
    %v65 = vunpack.c.l.b16 %v31
    %v66 = vunpack.c.l.b16 %v32
    %v67 = vunpack.c.l.b16 %v33
    %v68 = vunpack.c.l.b16 %v34
    %v69 = vunpack.c.l.b16 %v35
    %v70 = vunpack.c.l.b16 %v36
    %v71 = vunpack.c.l.b16 %v37
    %v72 = vunpack.c.l.b16 %v38
    %v73 = vunpack.c.l.b16 %v39
    %v74 = vunpack.c.l.b16 %v40
    %v75 = vunpack.c.l.b16 %v41
    %v76 = vunpack.c.l.b16 %v42
    %v77 = vunpack.c.l.b16 %v43
    %v78 = vunpack.c.l.b16 %v44
    %v79 = vunpack.c.l.b16 %v45
    %v80 = vpack.c.b16 %v65, %v64
    %v81 = vpack.c.b16 %v67, %v66
    %v82 = vpack.c.b16 %v69, %v68
    %v83 = vpack.c.b16 %v71, %v70
    %v84 = vpack.c.b16 %v73, %v72
    %v85 = vpack.c.b16 %v75, %v74
    %v86 = vpack.c.b16 %v77, %v76
    %v87 = vpack.c.b16 %v79, %v78
    %96 = vmatpush.bf16.msra.mxu0 %v87
    %97 = vmatpush.bf16.msra.mxu0 %v86
    %98 = vmatpush.bf16.msra.mxu0 %v85
    %99 = vmatpush.bf16.msra.mxu0 %v84
    %100 = vmatpush.bf16.msra.mxu0 %v83
    %101 = vmatpush.bf16.msra.mxu0 %v82
    %102 = vmatpush.bf16.msra.mxu0 %v81
    %103 = vmatpush.bf16.msra.mxu0 %v80
    %104 = vmatmul.bf16.gmra.mxu0 %v29
    %v105 = vpop.f32.mrf.mxu0
    %v106 = vadd.f32 %v47, %v105
    %v107 = vpop.f32.mrf.mxu0
    %108 = vdwg.mxu0
    %v109 = vmax.f32 %v106, 0.0
    %v110 = vpack.c.bf16 %v109, %v109
    %v111 = vld [vmem:[%s2] sm:$0xf]
    %v112 = vld [vmem:[%s2 + $0x4] sm:$0xf]
    %v113 = vld [vmem:[%s2 + $0x8] sm:$0xf]
    %v114 = vld [vmem:[%s2 + $0xc] sm:$0xf]
    %v115 = vld [vmem:[%s2 + $0x10] sm:$0xf]
    %v116 = vld [vmem:[%s2 + $0x14] sm:$0xf]
    %v117 = vld [vmem:[%s2 + $0x18] sm:$0xf]
    %v118 = vld [vmem:[%s2 + $0x1c] sm:$0xf]
    %v119 = vld [vmem:[%s2 + $0x20] sm:$0xf]
    %v120 = vld [vmem:[%s2 + $0x24] sm:$0xf]
    %v121 = vld [vmem:[%s2 + $0x28] sm:$0xf]
    %v122 = vld [vmem:[%s2 + $0x2c] sm:$0xf]
    %v123 = vld [vmem:[%s2 + $0x30] sm:$0xf]
    %v124 = vld [vmem:[%s2 + $0x34] sm:$0xf]
    %v125 = vld [vmem:[%s2 + $0x38] sm:$0xf]
    %v126 = vld [vmem:[%s2 + $0x3c] sm:$0xf]
    %v127 = vld [vmem:[%s5 + $0x1] sm:$0x1]
    %v128 = vperm.slane %v127, 0
    %v145 = vunpack.c.l.b16 %v111
    %v146 = vunpack.c.l.b16 %v112
    %v147 = vunpack.c.l.b16 %v113
    %v148 = vunpack.c.l.b16 %v114
    %v149 = vunpack.c.l.b16 %v115
    %v150 = vunpack.c.l.b16 %v116
    %v151 = vunpack.c.l.b16 %v117
    %v152 = vunpack.c.l.b16 %v118
    %v153 = vunpack.c.l.b16 %v119
    %v154 = vunpack.c.l.b16 %v120
    %v155 = vunpack.c.l.b16 %v121
    %v156 = vunpack.c.l.b16 %v122
    %v157 = vunpack.c.l.b16 %v123
    %v158 = vunpack.c.l.b16 %v124
    %v159 = vunpack.c.l.b16 %v125
    %v160 = vunpack.c.l.b16 %v126
    %v161 = vpack.c.b16 %v146, %v145
    %v162 = vpack.c.b16 %v148, %v147
    %v163 = vpack.c.b16 %v150, %v149
    %v164 = vpack.c.b16 %v152, %v151
    %v165 = vpack.c.b16 %v154, %v153
    %v166 = vpack.c.b16 %v156, %v155
    %v167 = vpack.c.b16 %v158, %v157
    %v168 = vpack.c.b16 %v160, %v159
    %177 = vmatpush.bf16.msra.mxu0 %v168
    %178 = vmatpush.bf16.msra.mxu0 %v167
    %179 = vmatpush.bf16.msra.mxu0 %v166
    %180 = vmatpush.bf16.msra.mxu0 %v165
    %181 = vmatpush.bf16.msra.mxu0 %v164
    %182 = vmatpush.bf16.msra.mxu0 %v163
    %183 = vmatpush.bf16.msra.mxu0 %v162
    %184 = vmatpush.bf16.msra.mxu0 %v161
    %185 = vmatmul.bf16.gmra.mxu0 %v110
    %v186 = vpop.f32.mrf.mxu0
    %v187 = vadd.f32 %v128, %v186
    %v188 = vpop.f32.mrf.mxu0
    %189 = vdwg.mxu0
    %v190 = vld [vmem:[%s5 + $0x2] sm:$0x1]
    %v191 = vld [vmem:[%s5 + $0x3] sm:$0x1]
    %v192 = vmul.f32 %v187, %v28
    %v193 = vrot.slane %v192, 4
    %v194 = vadd.f32 %v192, %v193
    %v195 = vrot.slane %v194, 2
    %v196 = vadd.f32 %v194, %v195
    %v197 = vrot.slane %v196, 1
    %v198 = vadd.f32 %v196, %v197
    %v199 = vmul.f32 %v192, %v187
    %v200 = vrot.slane %v199, 4
    %v201 = vadd.f32 %v199, %v200
    %v202 = vrot.slane %v201, 2
    %v203 = vadd.f32 %v201, %v202
    %v204 = vrot.slane %v203, 1
    %v205 = vadd.f32 %v203, %v204
    %v206 = vmul.f32 %v198, 0.125
    %v207 = vmul.f32 %v205, 0.125
    %v208 = vmul.f32 %v206, %v206
    %v209 = vsub.f32 %v207, %v208
    %v210 = vmax.f32 %v209, 0.0
    %v211 = vsub.f32 %v187, %v206
    %v212 = vadd.f32 %v210, 1e-05
    %v213 = vrsqrt.pop %v212
    %v214 = vmul.f32 %v213, %v212
    %v215 = vmul.f32 %v214, %v213
    %v216 = vmul.f32 0.5, %v215
    %v217 = vsub.f32 1.5, %v216
    %v218 = vmul.f32 %v213, %v217
    %vm219 = vweird.f32 %v212
    %vm220 = vweird.f32 %v213
    %vm221 = vmor %vm219, %vm220
    %v222 = vsel %vm221, %v213, %v218
    %v223 = vmul.f32 %v211, %v222
    %v224 = vperm.slane %v190, 0
    %v225 = vmul.f32 %v223, %v224
    %v226 = vperm.slane %v191, 0
    %v227 = vadd.f32 %v225, %v226
    %v228 = vmax.f32 %v227, 0.0
    %v229 = vpack.c.bf16 %v228, %v228
    %v230 = vld [vmem:[%s3] sm:$0xf]
    %v231 = vld [vmem:[%s3 + $0x4] sm:$0xf]
    %v232 = vld [vmem:[%s3 + $0x8] sm:$0xf]
    %v233 = vld [vmem:[%s3 + $0xc] sm:$0xf]
    %v234 = vld [vmem:[%s3 + $0x10] sm:$0xf]
    %v235 = vld [vmem:[%s3 + $0x14] sm:$0xf]
    %v236 = vld [vmem:[%s3 + $0x18] sm:$0xf]
    %v237 = vld [vmem:[%s3 + $0x1c] sm:$0xf]
    %v238 = vld [vmem:[%s3 + $0x20] sm:$0xf]
    %v239 = vld [vmem:[%s3 + $0x24] sm:$0xf]
    %v240 = vld [vmem:[%s3 + $0x28] sm:$0xf]
    %v241 = vld [vmem:[%s3 + $0x2c] sm:$0xf]
    %v242 = vld [vmem:[%s3 + $0x30] sm:$0xf]
    %v243 = vld [vmem:[%s3 + $0x34] sm:$0xf]
    %v244 = vld [vmem:[%s3 + $0x38] sm:$0xf]
    %v245 = vld [vmem:[%s3 + $0x3c] sm:$0xf]
    %v246 = vld [vmem:[%s5 + $0x4] sm:$0x1]
    %v247 = vperm.slane %v246, 0
    %v264 = vunpack.c.l.b16 %v230
    %v265 = vunpack.c.l.b16 %v231
    %v266 = vunpack.c.l.b16 %v232
    %v267 = vunpack.c.l.b16 %v233
    %v268 = vunpack.c.l.b16 %v234
    %v269 = vunpack.c.l.b16 %v235
    %v270 = vunpack.c.l.b16 %v236
    %v271 = vunpack.c.l.b16 %v237
    %v272 = vunpack.c.l.b16 %v238
    %v273 = vunpack.c.l.b16 %v239
    %v274 = vunpack.c.l.b16 %v240
    %v275 = vunpack.c.l.b16 %v241
    %v276 = vunpack.c.l.b16 %v242
    %v277 = vunpack.c.l.b16 %v243
    %v278 = vunpack.c.l.b16 %v244
    %v279 = vunpack.c.l.b16 %v245
    %v280 = vpack.c.b16 %v265, %v264
    %v281 = vpack.c.b16 %v267, %v266
    %v282 = vpack.c.b16 %v269, %v268
    %v283 = vpack.c.b16 %v271, %v270
    %v284 = vpack.c.b16 %v273, %v272
    %v285 = vpack.c.b16 %v275, %v274
    %v286 = vpack.c.b16 %v277, %v276
    %v287 = vpack.c.b16 %v279, %v278
    %296 = vmatpush.bf16.msra.mxu0 %v287
    %297 = vmatpush.bf16.msra.mxu0 %v286
    %298 = vmatpush.bf16.msra.mxu0 %v285
    %299 = vmatpush.bf16.msra.mxu0 %v284
    %300 = vmatpush.bf16.msra.mxu0 %v283
    %301 = vmatpush.bf16.msra.mxu0 %v282
    %302 = vmatpush.bf16.msra.mxu0 %v281
    %303 = vmatpush.bf16.msra.mxu0 %v280
    %304 = vmatmul.bf16.gmra.mxu0 %v229
    %v305 = vpop.f32.mrf.mxu0
    %v306 = vadd.f32 %v247, %v305
    %v307 = vpop.f32.mrf.mxu0
    %308 = vdwg.mxu0
    %v309 = vld [vmem:[%s5 + $0x5] sm:$0x1]
    %v310 = vld [vmem:[%s5 + $0x6] sm:$0x1]
    %v311 = vmul.f32 %v306, %v28
    %v312 = vrot.slane %v311, 4
    %v313 = vadd.f32 %v311, %v312
    %v314 = vrot.slane %v313, 2
    %v315 = vadd.f32 %v313, %v314
    %v316 = vrot.slane %v315, 1
    %v317 = vadd.f32 %v315, %v316
    %v318 = vmul.f32 %v311, %v306
    %v319 = vrot.slane %v318, 4
    %v320 = vadd.f32 %v318, %v319
    %v321 = vrot.slane %v320, 2
    %v322 = vadd.f32 %v320, %v321
    %v323 = vrot.slane %v322, 1
    %v324 = vadd.f32 %v322, %v323
    %v325 = vmul.f32 %v317, 0.125
    %v326 = vmul.f32 %v324, 0.125
    %v327 = vmul.f32 %v325, %v325
    %v328 = vsub.f32 %v326, %v327
    %v329 = vmax.f32 %v328, 0.0
    %v330 = vsub.f32 %v306, %v325
    %v331 = vadd.f32 %v329, 1e-05
    %v332 = vrsqrt.pop %v331
    %v333 = vmul.f32 %v332, %v331
    %v334 = vmul.f32 %v333, %v332
    %v335 = vmul.f32 0.5, %v334
    %v336 = vsub.f32 1.5, %v335
    %v337 = vmul.f32 %v332, %v336
    %vm338 = vweird.f32 %v331
    %vm339 = vweird.f32 %v332
    %vm340 = vmor %vm338, %vm339
    %v341 = vsel %vm340, %v332, %v337
    %v342 = vmul.f32 %v330, %v341
    %v343 = vperm.slane %v309, 0
    %v344 = vmul.f32 %v342, %v343
    %v345 = vperm.slane %v310, 0
    %v346 = vadd.f32 %v344, %v345
    %v347 = vmax.f32 %v346, 0.0
    %v348 = vpack.c.bf16 %v347, %v347
    %v349 = vld [vmem:[%s4] sm:$0xf]
    %v350 = vld [vmem:[%s4 + $0x4] sm:$0xf]
    %v351 = vld [vmem:[%s4 + $0x8] sm:$0xf]
    %v352 = vld [vmem:[%s4 + $0xc] sm:$0xf]
    %v353 = vld [vmem:[%s4 + $0x10] sm:$0xf]
    %v354 = vld [vmem:[%s4 + $0x14] sm:$0xf]
    %v355 = vld [vmem:[%s4 + $0x18] sm:$0xf]
    %v356 = vld [vmem:[%s4 + $0x1c] sm:$0xf]
    %v357 = vld [vmem:[%s4 + $0x20] sm:$0xf]
    %v358 = vld [vmem:[%s4 + $0x24] sm:$0xf]
    %v359 = vld [vmem:[%s4 + $0x28] sm:$0xf]
    %v360 = vld [vmem:[%s4 + $0x2c] sm:$0xf]
    %v361 = vld [vmem:[%s4 + $0x30] sm:$0xf]
    %v362 = vld [vmem:[%s4 + $0x34] sm:$0xf]
    %v363 = vld [vmem:[%s4 + $0x38] sm:$0xf]
    %v364 = vld [vmem:[%s4 + $0x3c] sm:$0xf]
    %v365 = vld [vmem:[%s5 + $0x7] sm:$0x1]
    %v366 = vperm.slane %v365, 0
    %v383 = vunpack.c.l.b16 %v349
    %v384 = vunpack.c.l.b16 %v350
    %v385 = vunpack.c.l.b16 %v351
    %v386 = vunpack.c.l.b16 %v352
    %v387 = vunpack.c.l.b16 %v353
    %v388 = vunpack.c.l.b16 %v354
    %v389 = vunpack.c.l.b16 %v355
    %v390 = vunpack.c.l.b16 %v356
    %v391 = vunpack.c.l.b16 %v357
    %v392 = vunpack.c.l.b16 %v358
    %v393 = vunpack.c.l.b16 %v359
    %v394 = vunpack.c.l.b16 %v360
    %v395 = vunpack.c.l.b16 %v361
    %v396 = vunpack.c.l.b16 %v362
    %v397 = vunpack.c.l.b16 %v363
    %v398 = vunpack.c.l.b16 %v364
    %v399 = vpack.c.b16 %v384, %v383
    %v400 = vpack.c.b16 %v386, %v385
    %v401 = vpack.c.b16 %v388, %v387
    %v402 = vpack.c.b16 %v390, %v389
    %v403 = vpack.c.b16 %v392, %v391
    %v404 = vpack.c.b16 %v394, %v393
    %v405 = vpack.c.b16 %v396, %v395
    %v406 = vpack.c.b16 %v398, %v397
    %415 = vmatpush.bf16.msra.mxu0 %v406
    %416 = vmatpush.bf16.msra.mxu0 %v405
    %417 = vmatpush.bf16.msra.mxu0 %v404
    %418 = vmatpush.bf16.msra.mxu0 %v403
    %419 = vmatpush.bf16.msra.mxu0 %v402
    %420 = vmatpush.bf16.msra.mxu0 %v401
    %421 = vmatpush.bf16.msra.mxu0 %v400
    %422 = vmatpush.bf16.msra.mxu0 %v399
    %423 = vmatmul.bf16.gmra.mxu0 %v348
    %v424 = vpop.f32.mrf.mxu0
    %v425 = vadd.f32 %v366, %v424
    %v426 = vpop.f32.mrf.mxu0
    %427 = vdwg.mxu0
    %428 = vmax.xlane.f32.xlu0 %v425
    %v429 = vpop.xlane.xlu0 %428
    %v430 = vsub.f32 %v425, %v429
    %v431 = vmul.f32 %v430, 1.442695
    %v432 = vpow.pop %v431
    %433 = vadd.xlane.f32.xlu0 %v432
    %v434 = vpop.xlane.xlu0 %433
    %v435 = vrcp.pop %v434
    %v436 = vmul.f32 %v434, %v435
    %v437 = vsub.f32 2.0, %v436
    %v438 = vmul.f32 %v435, %v437
    %v439 = vmul.f32 %v432, %v438
    %440 = vst [vmem:[#allocation2] sm:$0xff] %v439
    // Predicated region
    $region26: #{dnn_forward.1} parent=1 // pred_check
      _
    $region27: #{dnn_forward.1} parent=1 // pred_check_branch
      %442 = sbr.rel (0) target = $region29
    $region28: #{dnn_forward.1} parent=1 // pred_region
      %444 = vsyncadd [#allocation3], 0
      %s446 = sshll.u32 [#allocation2], 4
      %s447 = int_to_ptr.vmem [resolvable:$true] %s446
      %s448 = sshll.u32 %s6, 4
      %s449 = int_to_ptr.hbm [resolvable:$true] %s448
      %451 = dma.vmem_to_hbm [thread:$0]  %s447, 128, %s449, [#allocation3]
    $region29: #{dnn_forward.1} parent=1 // pred_fallthru
      _
    // Predicated region
    $region30: #{dnn_forward.1} parent=1 // pred_check
      _
    $region31: #{dnn_forward.1} parent=1 // pred_check_branch
      %453 = sbr.rel (0) target = $region33
    $region32: #{dnn_forward.1} parent=1 // pred_region
      %455 = dma.done [#allocation3], 128
    $region33: #{dnn_forward.1} parent=1 // pred_fallthru
      _
    %456 = vsyncpa [#allocation3], 1

</llo_original>
